<compile_context>
chip_gen: v7x
topology: tpu7x:2x2x1
jax: 0.10.0
libtpu: 0.0.40
codegen_flags: <defaults>
</compile_context>

<pallas_src>
import jax
import jax.numpy as jnp
import numpy as np
from jax import lax
from jax.experimental import pallas as pl
from jax.experimental.pallas import tpu as pltpu

# bf16 matmul inputs: MXU-native on v5e/v6e/v7x; accumulation is f32 via
# preferred_element_type.  (On v5e only, if activation down-casts ever show up
# as a VALU bottleneck, switching this back to jnp.float32 is acceptable.)
MATMUL_DTYPE = jnp.bfloat16

MAX_TILE_N = 1024   # upper bound on rows per grid step (~ a few MiB VMEM/step)


def _choose_tile(n):
    """Batch tile: multiple of 128 (it is the output lane axis), as large as
    possible up to MAX_TILE_N, but capped near ceil(n/2) so batches big enough
    to split keep >=2 grid steps (v7x megacore)."""
    half = -(-n // 2)                          # ceil(n / 2)
    tile = ((half + 127) // 128) * 128         # round up to multiple of 128
    return int(min(MAX_TILE_N, max(128, tile)))


def mynet3_kernel(x_ref, w1_ref, b1_ref, w2_ref, b2_ref,
                  wf1_ref, bf1_ref, wf2_ref, bf2_ref, wf3_ref, bf3_ref,
                  out_ref):
    # x and all weight matrices are already MATMUL_DTYPE (cast once in the
    # wrapper / prepare_params); biases are f32; accumulation is f32.
    x = x_ref[...]                                               # (TN, 120)
    # conv1 as GEMM -> (TN, 192) = (H'=4, W'=8, C=6) flat, +bias, ReLU
    h1 = jnp.maximum(
        jnp.dot(x, w1_ref[...], preferred_element_type=jnp.float32)
        + b1_ref[...], 0.0).astype(MATMUL_DTYPE)
    # conv2 as GEMM -> (TN, 72) = (H''=2, W''=6, C=6) flat, +bias, ReLU
    h2 = jnp.maximum(
        jnp.dot(h1, w2_ref[...], preferred_element_type=jnp.float32)
        + b2_ref[...], 0.0).astype(MATMUL_DTYPE)
    # fc1 (72 -> 120), ReLU
    z1 = jnp.maximum(
        jnp.dot(h2, wf1_ref[...], preferred_element_type=jnp.float32)
        + bf1_ref[...], 0.0).astype(MATMUL_DTYPE)
    # dropout(p=0.3) is identity at inference.
    # TODO(synk): training-mode dropout (pltpu.prng_seed / prng_random_bits) not implemented.
    # fc2 (120 -> 84), ReLU
    z2 = jnp.maximum(
        jnp.dot(z1, wf2_ref[...], preferred_element_type=jnp.float32)
        + bf2_ref[...], 0.0).astype(MATMUL_DTYPE)
    # fc3 (84 -> 2), computed transposed: (8,84) @ (TN,84)^T -> (8, TN) so the
    # store is lane-dense along the batch axis with only 8 sublanes written.
    out_ref[...] = (
        jnp.einsum("ck,nk->cn", wf3_ref[...], z2,
                   preferred_element_type=jnp.float32)
        + bf3_ref[...])                                          # (8, TN) f32


def conv_to_gemm_weight(w_hwio, in_h, in_w):
    """Toeplitz matrix W s.t. x_nhwc_flat @ W == valid-conv(x, w) NHWC-flattened."""
    kh, kw, cin, cout = w_hwio.shape
    oh, ow = in_h - kh + 1, in_w - kw + 1
    i, j, c, o, a, b = np.meshgrid(np.arange(kh), np.arange(kw), np.arange(cin),
                                   np.arange(cout), np.arange(oh), np.arange(ow),
                                   indexing="ij")
    rows = ((a + i) * in_w + (b + j)) * cin + c            # input flat index (H,W,C)
    cols = (a * ow + b) * cout + o                         # output flat index (H',W',C)
    vals = jnp.broadcast_to(w_hwio[:, :, :, :, None, None], i.shape)
    W = jnp.zeros((in_h * in_w * cin, oh * ow * cout), w_hwio.dtype)
    return W.at[rows.reshape(-1), cols.reshape(-1)].set(vals.reshape(-1))


def init_params(key):
    """Deterministic synthetic parameters in PyTorch layouts (OIHW convs, (out,in) FCs)."""
    ks = jax.random.split(key, 10)
    s = 0.1
    w1 = jax.random.normal(ks[0], (6, 2, 3, 3), jnp.float32) * s   # conv1 OIHW
    b1 = jax.random.normal(ks[1], (6,), jnp.float32) * s
    w2 = jax.random.normal(ks[2], (6, 6, 3, 3), jnp.float32) * s   # conv2 OIHW
    b2 = jax.random.normal(ks[3], (6,), jnp.float32) * s
    wf1 = jax.random.normal(ks[4], (120, 72), jnp.float32) * s     # input flat in (C,H,W)
    bf1 = jax.random.normal(ks[5], (120,), jnp.float32) * s
    wf2 = jax.random.normal(ks[6], (84, 120), jnp.float32) * s
    bf2 = jax.random.normal(ks[7], (84,), jnp.float32) * s
    wf3 = jax.random.normal(ks[8], (2, 84), jnp.float32) * s
    bf3 = jax.random.normal(ks[9], (2,), jnp.float32) * s
    return (w1, b1, w2, b2, wf1, bf1, wf2, bf2, wf3, bf3)


def prepare_params(params):
    """PyTorch-layout params -> GEMM-layout params consumed by the kernel.
    Weight matrices are pre-cast to MATMUL_DTYPE; biases stay f32."""
    w1, b1, w2, b2, wf1, bf1, wf2, bf2, wf3, bf3 = params
    w1_hwio = jnp.transpose(w1, (2, 3, 1, 0))                       # (3,3,2,6)
    w2_hwio = jnp.transpose(w2, (2, 3, 1, 0))                       # (3,3,6,6)
    W1 = conv_to_gemm_weight(w1_hwio, 6, 10).astype(MATMUL_DTYPE)   # (120, 192)
    B1 = jnp.tile(b1, 4 * 8)[None, :].astype(jnp.float32)           # (1, 192)
    W2 = conv_to_gemm_weight(w2_hwio, 4, 8).astype(MATMUL_DTYPE)    # (192, 72)
    B2 = jnp.tile(b2, 2 * 6)[None, :].astype(jnp.float32)           # (1, 72)
    # fc1: PyTorch flattens conv2 output in (C,H,W) order; our GEMM output is
    # (H,W,C) order -> permute weight columns accordingly.
    Wf1 = jnp.transpose(wf1.reshape(120, 6, 2, 6),
                        (2, 3, 1, 0)).reshape(72, 120).astype(MATMUL_DTYPE)
    Bf1 = bf1[None, :].astype(jnp.float32)                          # (1, 120)
    Wf2 = wf2.T.astype(MATMUL_DTYPE)                                # (120, 84)
    Bf2 = bf2[None, :].astype(jnp.float32)                          # (1, 84)
    # fc3 kept in PyTorch (out,in) orientation, padded to 8 output rows so the
    # kernel emits a transposed (8, TN) lane-dense result; wrapper takes [:2].
    Wf3t = jnp.zeros((8, 84), jnp.float32).at[:2, :].set(wf3).astype(MATMUL_DTYPE)
    Bf3t = jnp.zeros((8, 1), jnp.float32).at[:2, 0].set(bf3)
    return (W1, B1, W2, B2, Wf1, Bf1, Wf2, Bf2, Wf3t, Bf3t)


@jax.jit
def mynet3_forward(x, prepared):
    # PyTorch: x = x.view(-1, 2, 6, 10)  (NCHW) -> NHWC -> flat (N, 120) in (H,W,C).
    xr = x.reshape(-1, 2, 6, 10).astype(jnp.float32)
    x_flat = jnp.transpose(xr, (0, 2, 3, 1)).reshape(-1, 6 * 10 * 2)
    N = x_flat.shape[0]
    tile_n = _choose_tile(N)
    n_steps = pl.cdiv(N, tile_n)
    Np = n_steps * tile_n
    # bf16 input halves the input DMA; the kernel would down-cast anyway.
    x_pad = jnp.pad(x_flat, ((0, Np - N), (0, 0))).astype(MATMUL_DTYPE)

    weight_specs = [pl.BlockSpec(p.shape, lambda i: (0, 0)) for p in prepared]
    flops = 2 * Np * (120 * 192 + 192 * 72 + 72 * 120 + 120 * 84 + 84 * 8)
    bytes_accessed = (x_pad.size * x_pad.dtype.itemsize
                      + 8 * Np * 4
                      + sum(int(p.size) * p.dtype.itemsize for p in prepared))

    out_t = pl.pallas_call(
        mynet3_kernel,
        out_shape=jax.ShapeDtypeStruct((8, Np), jnp.float32),
        grid=(n_steps,),
        in_specs=[pl.BlockSpec((tile_n, 120), lambda i: (i, 0))] + weight_specs,
        out_specs=pl.BlockSpec((8, tile_n), lambda i: (0, i)),
        compiler_params=pltpu.CompilerParams(
            dimension_semantics=("parallel",),
            vmem_limit_bytes=48 * 1024 * 1024),
        cost_estimate=pl.CostEstimate(flops=flops, transcendentals=0,
                                      bytes_accessed=bytes_accessed),
    )(x_pad, *prepared)
    # (8, Np) -> (N, 2): keep the 2 real output channels, drop batch padding.
    return out_t[:2, :N].T


def mynet3_ref(x, params):
    """Pure-JAX reference mirroring the PyTorch forward (dropout = identity)."""
    w1, b1, w2, b2, wf1, bf1, wf2, bf2, wf3, bf3 = params
    xr = x.reshape(-1, 2, 6, 10).astype(jnp.float32)                 # NCHW
    dn = ("NCHW", "OIHW", "NCHW")
    h1 = jax.nn.relu(
        lax.conv_general_dilated(
            xr, w1, (1, 1), "VALID",
            dimension_numbers=lax.conv_dimension_numbers(xr.shape, w1.shape, dn))
        + b1[None, :, None, None])
    h2 = jax.nn.relu(
        lax.conv_general_dilated(
            h1, w2, (1, 1), "VALID",
            dimension_numbers=lax.conv_dimension_numbers(h1.shape, w2.shape, dn))
        + b2[None, :, None, None])
    flat = h2.reshape(h2.shape[0], -1)                               # (N,72) in (C,H,W)
    z1 = jax.nn.relu(flat @ wf1.T + bf1)
    z2 = jax.nn.relu(z1 @ wf2.T + bf2)
    return z2 @ wf3.T + bf3


if __name__ == "__main__":
    key = jax.random.PRNGKey(0)
    kx, kp = jax.random.split(key)
    params = init_params(kp)            # PyTorch-layout parameters
    prepared = prepare_params(params)   # GEMM-layout (bf16) parameters for the kernel

    # Small shapes consistent with the module: input viewable as (-1,2,6,10), batch=2.
    x_small = jax.random.normal(kx, (2, 2, 6, 10), jnp.float32)
    out_small = mynet3_forward(x_small, prepared)
    jax.block_until_ready(out_small)
    ref_small = mynet3_ref(x_small, params)
    assert out_small.shape == (2, 2), out_small.shape
    # bf16 matmul inputs (kernel and TPU default-precision reference) -> loose tolerance.
    assert jnp.allclose(out_small, ref_small, rtol=3e-2, atol=3e-2), \
        f"max abs err {jnp.max(jnp.abs(out_small - ref_small))}"

    # Multi-step grid + padding test: N > tile and N not a multiple of the tile.
    x_big = jax.random.normal(jax.random.PRNGKey(1), (300, 2, 6, 10), jnp.float32)
    out_big = mynet3_forward(x_big, prepared)
    jax.block_until_ready(out_big)
    ref_big = mynet3_ref(x_big, params)
    assert out_big.shape == (300, 2), out_big.shape
    assert jnp.allclose(out_big, ref_big, rtol=3e-2, atol=3e-2), \
        f"max abs err {jnp.max(jnp.abs(out_big - ref_big))}"

    print("KERNEL_OK")
</pallas_src>

<mosaic_0001>
module attributes {stable_mosaic.version = 11 : i64} {
  func.func @mynet3_kernel(%arg0: i32, %arg1: memref<128x120xbf16, #tpu.memory_space<vmem>>, %arg2: memref<120x192xbf16, #tpu.memory_space<vmem>>, %arg3: memref<1x192xf32, #tpu.memory_space<vmem>>, %arg4: memref<192x72xbf16, #tpu.memory_space<vmem>>, %arg5: memref<1x72xf32, #tpu.memory_space<vmem>>, %arg6: memref<72x120xbf16, #tpu.memory_space<vmem>>, %arg7: memref<1x120xf32, #tpu.memory_space<vmem>>, %arg8: memref<120x84xbf16, #tpu.memory_space<vmem>>, %arg9: memref<1x84xf32, #tpu.memory_space<vmem>>, %arg10: memref<8x84xbf16, #tpu.memory_space<vmem>>, %arg11: memref<8x1xf32, #tpu.memory_space<vmem>>, %arg12: memref<8x128xf32, #tpu.memory_space<vmem>>) attributes {dimension_semantics = [#tpu.dimension_semantics<parallel>], iteration_bounds = array<i64: 1>, scalar_prefetch = 0 : i64, scratch_operands = 0 : i64, tpu.core_type = #tpu.core_type<tc>, window_params = [{transform_indices = @transform_0, window_bounds = array<i64: 128, 120>}, {pipeline_mode = #tpu.pipeline_mode<synchronous>, transform_indices = @transform_1, window_bounds = array<i64: 120, 192>}, {pipeline_mode = #tpu.pipeline_mode<synchronous>, transform_indices = @transform_2, window_bounds = array<i64: 1, 192>}, {pipeline_mode = #tpu.pipeline_mode<synchronous>, transform_indices = @transform_3, window_bounds = array<i64: 192, 72>}, {pipeline_mode = #tpu.pipeline_mode<synchronous>, transform_indices = @transform_4, window_bounds = array<i64: 1, 72>}, {pipeline_mode = #tpu.pipeline_mode<synchronous>, transform_indices = @transform_5, window_bounds = array<i64: 72, 120>}, {pipeline_mode = #tpu.pipeline_mode<synchronous>, transform_indices = @transform_6, window_bounds = array<i64: 1, 120>}, {pipeline_mode = #tpu.pipeline_mode<synchronous>, transform_indices = @transform_7, window_bounds = array<i64: 120, 84>}, {pipeline_mode = #tpu.pipeline_mode<synchronous>, transform_indices = @transform_8, window_bounds = array<i64: 1, 84>}, {pipeline_mode = #tpu.pipeline_mode<synchronous>, transform_indices = @transform_9, window_bounds = array<i64: 8, 84>}, {pipeline_mode = #tpu.pipeline_mode<synchronous>, transform_indices = @transform_10, window_bounds = array<i64: 8, 1>}, {transform_indices = @transform_11, window_bounds = array<i64: 8, 128>}]} {
    %c0 = arith.constant 0 : index
    %c0_0 = arith.constant 0 : index
    %0 = vector.load %arg1[%c0, %c0_0] : memref<128x120xbf16, #tpu.memory_space<vmem>>, vector<128x120xbf16>
    %c0_1 = arith.constant 0 : index
    %c0_2 = arith.constant 0 : index
    %1 = vector.load %arg2[%c0_1, %c0_2] : memref<120x192xbf16, #tpu.memory_space<vmem>>, vector<120x192xbf16>
    %cst = arith.constant dense<0.000000e+00> : vector<128x192xf32>
    %2 = tpu.matmul %0, %1, %cst {dimension_numbers = #tpu.dot_dimension_numbers<[1], [0], [0], [1], [0, 0, 1, 1], [], []>} : vector<128x120xbf16>, vector<120x192xbf16>, vector<128x192xf32> -> vector<128x192xf32>
    %c0_3 = arith.constant 0 : index
    %c0_4 = arith.constant 0 : index
    %3 = vector.load %arg3[%c0_3, %c0_4] : memref<1x192xf32, #tpu.memory_space<vmem>>, vector<1x192xf32>
    %4 = vector.broadcast %3 : vector<1x192xf32> to vector<128x192xf32>
    %5 = arith.addf %2, %4 : vector<128x192xf32>
    %cst_5 = arith.constant 0.000000e+00 : f32
    %6 = vector.broadcast %cst_5 : f32 to vector<128x192xf32>
    %7 = arith.maximumf %5, %6 : vector<128x192xf32>
    %8 = arith.truncf %7 : vector<128x192xf32> to vector<128x192xbf16>
    %c0_6 = arith.constant 0 : index
    %c0_7 = arith.constant 0 : index
    %9 = vector.load %arg4[%c0_6, %c0_7] : memref<192x72xbf16, #tpu.memory_space<vmem>>, vector<192x72xbf16>
    %cst_8 = arith.constant dense<0.000000e+00> : vector<128x72xf32>
    %10 = tpu.matmul %8, %9, %cst_8 {dimension_numbers = #tpu.dot_dimension_numbers<[1], [0], [0], [1], [0, 0, 1, 1], [], []>} : vector<128x192xbf16>, vector<192x72xbf16>, vector<128x72xf32> -> vector<128x72xf32>
    %c0_9 = arith.constant 0 : index
    %c0_10 = arith.constant 0 : index
    %11 = vector.load %arg5[%c0_9, %c0_10] : memref<1x72xf32, #tpu.memory_space<vmem>>, vector<1x72xf32>
    %12 = vector.broadcast %11 : vector<1x72xf32> to vector<128x72xf32>
    %13 = arith.addf %10, %12 : vector<128x72xf32>
    %cst_11 = arith.constant 0.000000e+00 : f32
    %14 = vector.broadcast %cst_11 : f32 to vector<128x72xf32>
    %15 = arith.maximumf %13, %14 : vector<128x72xf32>
    %16 = arith.truncf %15 : vector<128x72xf32> to vector<128x72xbf16>
    %c0_12 = arith.constant 0 : index
    %c0_13 = arith.constant 0 : index
    %17 = vector.load %arg6[%c0_12, %c0_13] : memref<72x120xbf16, #tpu.memory_space<vmem>>, vector<72x120xbf16>
    %cst_14 = arith.constant dense<0.000000e+00> : vector<128x120xf32>
    %18 = tpu.matmul %16, %17, %cst_14 {dimension_numbers = #tpu.dot_dimension_numbers<[1], [0], [0], [1], [0, 0, 1, 1], [], []>} : vector<128x72xbf16>, vector<72x120xbf16>, vector<128x120xf32> -> vector<128x120xf32>
    %c0_15 = arith.constant 0 : index
    %c0_16 = arith.constant 0 : index
    %19 = vector.load %arg7[%c0_15, %c0_16] : memref<1x120xf32, #tpu.memory_space<vmem>>, vector<1x120xf32>
    %20 = vector.broadcast %19 : vector<1x120xf32> to vector<128x120xf32>
    %21 = arith.addf %18, %20 : vector<128x120xf32>
    %cst_17 = arith.constant 0.000000e+00 : f32
    %22 = vector.broadcast %cst_17 : f32 to vector<128x120xf32>
    %23 = arith.maximumf %21, %22 : vector<128x120xf32>
    %24 = arith.truncf %23 : vector<128x120xf32> to vector<128x120xbf16>
    %c0_18 = arith.constant 0 : index
    %c0_19 = arith.constant 0 : index
    %25 = vector.load %arg8[%c0_18, %c0_19] : memref<120x84xbf16, #tpu.memory_space<vmem>>, vector<120x84xbf16>
    %cst_20 = arith.constant dense<0.000000e+00> : vector<128x84xf32>
    %26 = tpu.matmul %24, %25, %cst_20 {dimension_numbers = #tpu.dot_dimension_numbers<[1], [0], [0], [1], [0, 0, 1, 1], [], []>} : vector<128x120xbf16>, vector<120x84xbf16>, vector<128x84xf32> -> vector<128x84xf32>
    %c0_21 = arith.constant 0 : index
    %c0_22 = arith.constant 0 : index
    %27 = vector.load %arg9[%c0_21, %c0_22] : memref<1x84xf32, #tpu.memory_space<vmem>>, vector<1x84xf32>
    %28 = vector.broadcast %27 : vector<1x84xf32> to vector<128x84xf32>
    %29 = arith.addf %26, %28 : vector<128x84xf32>
    %cst_23 = arith.constant 0.000000e+00 : f32
    %30 = vector.broadcast %cst_23 : f32 to vector<128x84xf32>
    %31 = arith.maximumf %29, %30 : vector<128x84xf32>
    %32 = arith.truncf %31 : vector<128x84xf32> to vector<128x84xbf16>
    %c0_24 = arith.constant 0 : index
    %c0_25 = arith.constant 0 : index
    %33 = vector.load %arg10[%c0_24, %c0_25] : memref<8x84xbf16, #tpu.memory_space<vmem>>, vector<8x84xbf16>
    "tpu.trace_start"() <{level = 10 : i32, message = "ck,nk->cn"}> : () -> ()
    %cst_26 = arith.constant dense<0.000000e+00> : vector<8x128xf32>
    %34 = tpu.matmul %33, %32, %cst_26 {dimension_numbers = #tpu.dot_dimension_numbers<[1], [1], [0], [0], [0, 0, 1, 0], [], []>} : vector<8x84xbf16>, vector<128x84xbf16>, vector<8x128xf32> -> vector<8x128xf32>
    "tpu.trace_stop"() : () -> ()
    %c0_27 = arith.constant 0 : index
    %c0_28 = arith.constant 0 : index
    %35 = vector.load %arg11[%c0_27, %c0_28] : memref<8x1xf32, #tpu.memory_space<vmem>>, vector<8x1xf32>
    %36 = vector.broadcast %35 : vector<8x1xf32> to vector<8x128xf32>
    %37 = arith.addf %34, %36 : vector<8x128xf32>
    %c0_29 = arith.constant 0 : index
    %c0_30 = arith.constant 0 : index
    %38 = vector.load %arg12[%c0_29, %c0_30] : memref<8x128xf32, #tpu.memory_space<vmem>>, vector<8x128xf32>
    tpu.vector_store %arg12[%c0_29, %c0_30], %37 {strides = array<i32>} : memref<8x128xf32, #tpu.memory_space<vmem>>, vector<8x128xf32>,
    return
  }
  func.func @transform_0(%arg0: i32) -> (i32, i32) {
    %c0_i32 = arith.constant 0 : i32
    %c0_i32_0 = arith.constant 0 : i32
    return %arg0, %c0_i32 : i32, i32
  }
  func.func @transform_1(%arg0: i32) -> (i32, i32) {
    %c0_i32 = arith.constant 0 : i32
    %c0_i32_0 = arith.constant 0 : i32
    %c0_i32_1 = arith.constant 0 : i32
    return %c0_i32, %c0_i32_0 : i32, i32
  }
  func.func @transform_2(%arg0: i32) -> (i32, i32) {
    %c0_i32 = arith.constant 0 : i32
    %c0_i32_0 = arith.constant 0 : i32
    %c0_i32_1 = arith.constant 0 : i32
    return %c0_i32, %c0_i32_0 : i32, i32
  }
  func.func @transform_3(%arg0: i32) -> (i32, i32) {
    %c0_i32 = arith.constant 0 : i32
    %c0_i32_0 = arith.constant 0 : i32
    %c0_i32_1 = arith.constant 0 : i32
    return %c0_i32, %c0_i32_0 : i32, i32
  }
  func.func @transform_4(%arg0: i32) -> (i32, i32) {
    %c0_i32 = arith.constant 0 : i32
    %c0_i32_0 = arith.constant 0 : i32
    %c0_i32_1 = arith.constant 0 : i32
    return %c0_i32, %c0_i32_0 : i32, i32
  }
  func.func @transform_5(%arg0: i32) -> (i32, i32) {
    %c0_i32 = arith.constant 0 : i32
    %c0_i32_0 = arith.constant 0 : i32
    %c0_i32_1 = arith.constant 0 : i32
    return %c0_i32, %c0_i32_0 : i32, i32
  }
  func.func @transform_6(%arg0: i32) -> (i32, i32) {
    %c0_i32 = arith.constant 0 : i32
    %c0_i32_0 = arith.constant 0 : i32
    %c0_i32_1 = arith.constant 0 : i32
    return %c0_i32, %c0_i32_0 : i32, i32
  }
  func.func @transform_7(%arg0: i32) -> (i32, i32) {
    %c0_i32 = arith.constant 0 : i32
    %c0_i32_0 = arith.constant 0 : i32
    %c0_i32_1 = arith.constant 0 : i32
    return %c0_i32, %c0_i32_0 : i32, i32
  }
  func.func @transform_8(%arg0: i32) -> (i32, i32) {
    %c0_i32 = arith.constant 0 : i32
    %c0_i32_0 = arith.constant 0 : i32
    %c0_i32_1 = arith.constant 0 : i32
    return %c0_i32, %c0_i32_0 : i32, i32
  }
  func.func @transform_9(%arg0: i32) -> (i32, i32) {
    %c0_i32 = arith.constant 0 : i32
    %c0_i32_0 = arith.constant 0 : i32
    %c0_i32_1 = arith.constant 0 : i32
    return %c0_i32, %c0_i32_0 : i32, i32
  }
  func.func @transform_10(%arg0: i32) -> (i32, i32) {
    %c0_i32 = arith.constant 0 : i32
    %c0_i32_0 = arith.constant 0 : i32
    %c0_i32_1 = arith.constant 0 : i32
    return %c0_i32, %c0_i32_0 : i32, i32
  }
  func.func @transform_11(%arg0: i32) -> (i32, i32) {
    %c0_i32 = arith.constant 0 : i32
    %c0_i32_0 = arith.constant 0 : i32
    return %c0_i32, %arg0 : i32, i32
  }
}

</mosaic_0001>

<llo_original>
// kernel: mynet3_forward.1
$region0: #{mynet3_forward.1}
  #allocation0 [shape = 'u32[]', space=smem, size = 0x4, offset = 0x4, fixed_abs, tag = 'smem constant byte address 0x4 - core index']
  #allocation1 [shape = 'u32[144,128]{1,0:T(1,128)}', space=vmem, size = 0x12000, scoped, tag = 'internal scratch']
  %s0 = inlined_call_operand.vmem [shape: bf16[128,120], index: 0, kind: input, shape index: {}]
  %s1 = inlined_call_operand.vmem [shape: bf16[120,192], index: 1, kind: input, shape index: {}]
  %s2 = inlined_call_operand.vmem [shape: f32[1,192], index: 2, kind: input, shape index: {}]
  %s3 = inlined_call_operand.vmem [shape: bf16[192,72], index: 3, kind: input, shape index: {}]
  %s4 = inlined_call_operand.vmem [shape: f32[1,72], index: 4, kind: input, shape index: {}]
  %s5 = inlined_call_operand.vmem [shape: bf16[72,120], index: 5, kind: input, shape index: {}]
  %s6 = inlined_call_operand.vmem [shape: f32[1,120], index: 6, kind: input, shape index: {}]
  %s7 = inlined_call_operand.vmem [shape: bf16[120,84], index: 7, kind: input, shape index: {}]
  %s8 = inlined_call_operand.vmem [shape: f32[1,84], index: 8, kind: input, shape index: {}]
  %s9 = inlined_call_operand.vmem [shape: bf16[8,84], index: 9, kind: input, shape index: {}]
  %s10 = inlined_call_operand.vmem [shape: f32[8,1], index: 10, kind: input, shape index: {}]
  %s11 = inlined_call_operand.vmem [shape: f32[8,128], index: 11, kind: output, shape index: {}]
  %s12 = sld [smem:[#allocation0]]
  $region54: #{mynet3_forward.1} parent=0
    _
  %s14 = ssub.s32 1, %s12
  %s15 = scalar_select 0, %s14, %s12
  // Predicated region
  $region2: #{mynet3_forward.1} parent=0 // pred_check
    _
  $region3: #{mynet3_forward.1} parent=0 // pred_check_branch
    %17 = sbr.rel (0) target = $region5
  $region4: #{mynet3_forward.1} parent=0 // pred_region
    _
  $region5: #{mynet3_forward.1} parent=0 // pred_fallthru
    _
  // Predicated region
  $region6: #{mynet3_forward.1} parent=0 // pred_check
    _
  $region7: #{mynet3_forward.1} parent=0 // pred_check_branch
    %19 = sbr.rel (0) target = $region9
  $region8: #{mynet3_forward.1} parent=0 // pred_region
    _
  $region9: #{mynet3_forward.1} parent=0 // pred_fallthru
    _
  // Predicated region
  $region10: #{mynet3_forward.1} parent=0 // pred_check
    _
  $region11: #{mynet3_forward.1} parent=0 // pred_check_branch
    %21 = sbr.rel (0) target = $region13
  $region12: #{mynet3_forward.1} parent=0 // pred_region
    _
  $region13: #{mynet3_forward.1} parent=0 // pred_fallthru
    _
  // Predicated region
  $region14: #{mynet3_forward.1} parent=0 // pred_check
    _
  $region15: #{mynet3_forward.1} parent=0 // pred_check_branch
    %23 = sbr.rel (0) target = $region17
  $region16: #{mynet3_forward.1} parent=0 // pred_region
    _
  $region17: #{mynet3_forward.1} parent=0 // pred_fallthru
    _
  // Predicated region
  $region18: #{mynet3_forward.1} parent=0 // pred_check
    _
  $region19: #{mynet3_forward.1} parent=0 // pred_check_branch
    %25 = sbr.rel (0) target = $region21
  $region20: #{mynet3_forward.1} parent=0 // pred_region
    _
  $region21: #{mynet3_forward.1} parent=0 // pred_fallthru
    _
  // Predicated region
  $region22: #{mynet3_forward.1} parent=0 // pred_check
    _
  $region23: #{mynet3_forward.1} parent=0 // pred_check_branch
    %27 = sbr.rel (0) target = $region25
  $region24: #{mynet3_forward.1} parent=0 // pred_region
    _
  $region25: #{mynet3_forward.1} parent=0 // pred_fallthru
    _
  // Predicated region
  $region26: #{mynet3_forward.1} parent=0 // pred_check
    _
  $region27: #{mynet3_forward.1} parent=0 // pred_check_branch
    %29 = sbr.rel (0) target = $region29
  $region28: #{mynet3_forward.1} parent=0 // pred_region
    _
  $region29: #{mynet3_forward.1} parent=0 // pred_fallthru
    _
  // Predicated region
  $region30: #{mynet3_forward.1} parent=0 // pred_check
    _
  $region31: #{mynet3_forward.1} parent=0 // pred_check_branch
    %31 = sbr.rel (0) target = $region33
  $region32: #{mynet3_forward.1} parent=0 // pred_region
    _
  $region33: #{mynet3_forward.1} parent=0 // pred_fallthru
    _
  // Predicated region
  $region34: #{mynet3_forward.1} parent=0 // pred_check
    _
  $region35: #{mynet3_forward.1} parent=0 // pred_check_branch
    %33 = sbr.rel (0) target = $region37
  $region36: #{mynet3_forward.1} parent=0 // pred_region
    _
  $region37: #{mynet3_forward.1} parent=0 // pred_fallthru
    _
  // Predicated region
  $region38: #{mynet3_forward.1} parent=0 // pred_check
    _
  $region39: #{mynet3_forward.1} parent=0 // pred_check_branch
    %35 = sbr.rel (0) target = $region41
  $region40: #{mynet3_forward.1} parent=0 // pred_region
    _
  $region41: #{mynet3_forward.1} parent=0 // pred_fallthru
    _
  // Predicated region
  $region42: #{mynet3_forward.1} parent=0 // pred_check
    _
  $region43: #{mynet3_forward.1} parent=0 // pred_check_branch
    %37 = sbr.rel (0) target = $region45
  $region44: #{mynet3_forward.1} parent=0 // pred_region
    _
  $region45: #{mynet3_forward.1} parent=0 // pred_fallthru
    _
  %v39 = vld [vmem:[%s0] sm:$0xf]
  %v40 = vld [vmem:[%s0 + $0x4] sm:$0xf]
  %v41 = vld [vmem:[%s0 + $0x8] sm:$0xf]
  %v42 = vld [vmem:[%s0 + $0xc] sm:$0xf]
  %v43 = vld [vmem:[%s0 + $0x10] sm:$0xf]
  %v44 = vld [vmem:[%s0 + $0x14] sm:$0xf]
  %v45 = vld [vmem:[%s0 + $0x18] sm:$0xf]
  %v46 = vld [vmem:[%s0 + $0x1c] sm:$0xf]
  %v47 = vld [vmem:[%s0 + $0x20] sm:$0xf]
  %v48 = vld [vmem:[%s0 + $0x24] sm:$0xf]
  %v49 = vld [vmem:[%s0 + $0x28] sm:$0xf]
  %v50 = vld [vmem:[%s0 + $0x2c] sm:$0xf]
  %v51 = vld [vmem:[%s0 + $0x30] sm:$0xf]
  %v52 = vld [vmem:[%s0 + $0x34] sm:$0xf]
  %v53 = vld [vmem:[%s0 + $0x38] sm:$0xf]
  %v54 = vld [vmem:[%s0 + $0x3c] sm:$0xf]
  %v55 = vld [vmem:[%s1] sm:$0xff]
  %v56 = vld [vmem:[%s1 + $0x8] sm:$0xff]
  %v57 = vld [vmem:[%s1 + $0x10] sm:$0xff]
  %v58 = vld [vmem:[%s1 + $0x18] sm:$0xff]
  %v59 = vld [vmem:[%s1 + $0x20] sm:$0xff]
  %v60 = vld [vmem:[%s1 + $0x28] sm:$0xff]
  %v61 = vld [vmem:[%s1 + $0x30] sm:$0xff]
  %v62 = vld [vmem:[%s1 + $0x38] sm:$0xff]
  %v63 = vld [vmem:[%s1 + $0x40] sm:$0xff]
  %v64 = vld [vmem:[%s1 + $0x48] sm:$0xff]
  %v65 = vld [vmem:[%s1 + $0x50] sm:$0xff]
  %v66 = vld [vmem:[%s1 + $0x58] sm:$0xff]
  %v67 = vld [vmem:[%s1 + $0x60] sm:$0xff]
  %v68 = vld [vmem:[%s1 + $0x68] sm:$0xff]
  %v69 = vld [vmem:[%s1 + $0x70] sm:$0xff]
  %v70 = vld [vmem:[%s2] sm:$0x3]
  %v72 = vlaneseq
  %v73 = vshrl.u32 %v72, 7
  %v74 = vsub.s32 0, %v73
  %v75 = vrot.slane %v70, %v74
  %v76 = vlaneseq
  %v77 = vshrl.u32 %v76, 7
  %v78 = vsub.s32 1, %v77
  %v79 = vrot.slane %v70, %v78
  %v98 = vunpack.c.l.b16 %v39
  %v99 = vunpack.c.l.b16 %v40
  %v100 = vunpack.c.l.b16 %v41
  %v101 = vunpack.c.l.b16 %v42
  %v102 = vunpack.c.l.b16 %v43
  %v103 = vunpack.c.l.b16 %v44
  %v104 = vunpack.c.l.b16 %v45
  %v105 = vunpack.c.l.b16 %v46
  %v106 = vunpack.c.l.b16 %v47
  %v107 = vunpack.c.l.b16 %v48
  %v108 = vunpack.c.l.b16 %v49
  %v109 = vunpack.c.l.b16 %v50
  %v110 = vunpack.c.l.b16 %v51
  %v111 = vunpack.c.l.b16 %v52
  %v112 = vunpack.c.l.b16 %v53
  %v113 = vunpack.c.l.b16 %v54
  %v114 = vpack.c.b16 %v99, %v98
  %v115 = vpack.c.b16 %v101, %v100
  %v116 = vpack.c.b16 %v103, %v102
  %v117 = vpack.c.b16 %v105, %v104
  %v118 = vpack.c.b16 %v107, %v106
  %v119 = vpack.c.b16 %v109, %v108
  %v120 = vpack.c.b16 %v111, %v110
  %v121 = vpack.c.b16 %v113, %v112
  %v137 = vunpack.c.l.b16 %v55
  %v138 = vunpack.c.h.b16 %v55
  %v139 = vunpack.c.l.b16 %v56
  %v140 = vunpack.c.h.b16 %v56
  %v141 = vunpack.c.l.b16 %v57
  %v142 = vunpack.c.h.b16 %v57
  %v143 = vunpack.c.l.b16 %v58
  %v144 = vunpack.c.h.b16 %v58
  %v145 = vunpack.c.l.b16 %v59
  %v146 = vunpack.c.h.b16 %v59
  %v147 = vunpack.c.l.b16 %v60
  %v148 = vunpack.c.h.b16 %v60
  %v149 = vunpack.c.l.b16 %v61
  %v150 = vunpack.c.h.b16 %v61
  %v151 = vunpack.c.l.b16 %v62
  %v152 = vunpack.c.h.b16 %v62
  %v153 = vunpack.c.l.b16 %v63
  %v154 = vunpack.c.h.b16 %v63
  %v155 = vunpack.c.l.b16 %v64
  %v156 = vunpack.c.h.b16 %v64
  %v157 = vunpack.c.l.b16 %v65
  %v158 = vunpack.c.h.b16 %v65
  %v159 = vunpack.c.l.b16 %v66
  %v160 = vunpack.c.h.b16 %v66
  %v161 = vunpack.c.l.b16 %v67
  %v162 = vunpack.c.h.b16 %v67
  %v163 = vunpack.c.l.b16 %v68
  %v164 = vunpack.c.h.b16 %v68
  %v165 = vunpack.c.l.b16 %v69
  %v166 = vunpack.c.h.b16 %v69
  %v167 = vpack.c.b16 %v139, %v137
  %v168 = vpack.c.b16 %v140, %v138
  %v169 = vpack.c.b16 %v143, %v141
  %v170 = vpack.c.b16 %v144, %v142
  %v171 = vpack.c.b16 %v147, %v145
  %v172 = vpack.c.b16 %v148, %v146
  %v173 = vpack.c.b16 %v151, %v149
  %v174 = vpack.c.b16 %v152, %v150
  %v175 = vpack.c.b16 %v155, %v153
  %v176 = vpack.c.b16 %v156, %v154
  %v177 = vpack.c.b16 %v159, %v157
  %v178 = vpack.c.b16 %v160, %v158
  %v179 = vpack.c.b16 %v163, %v161
  %v180 = vpack.c.b16 %v164, %v162
  %v181 = vpack.c.b16 %v165, %v165
  %v182 = vpack.c.b16 %v166, %v166
  %vm197 = vcmask 982016
  %v199 = vsel %vm197, %v114, 0
  %v202 = vsel %vm197, %v115, 0
  %v205 = vsel %vm197, %v116, 0
  %v208 = vsel %vm197, %v117, 0
  %v211 = vsel %vm197, %v118, 0
  %v214 = vsel %vm197, %v119, 0
  %v217 = vsel %vm197, %v120, 0
  %v220 = vsel %vm197, %v121, 0
  %vm222 = vcmask 1043456
  %v224 = vsel %vm222, %v181, 0
  %v227 = vsel %vm222, %v182, 0
  %229 = vmatprep.subr.bf16.mxu0 %v168
  %230 = vmatpush1.bf16.msra.mxu0 %v167
  %231 = vmatprep.subr.bf16.mxu0 %v170
  %232 = vmatpush1.bf16.msra.mxu0 %v169
  %233 = vmatprep.subr.bf16.mxu0 %v172
  %234 = vmatpush1.bf16.msra.mxu0 %v171
  %235 = vmatprep.subr.bf16.mxu0 %v174
  %236 = vmatpush1.bf16.msra.mxu0 %v173
  %237 = vmatprep.subr.bf16.mxu0 %v176
  %238 = vmatpush1.bf16.msra.mxu0 %v175
  %239 = vmatprep.subr.bf16.mxu0 %v178
  %240 = vmatpush1.bf16.msra.mxu0 %v177
  %241 = vmatprep.subr.bf16.mxu0 %v180
  %242 = vmatpush1.bf16.msra.mxu0 %v179
  %243 = vmatprep.subr.bf16.mxu0 %v227
  %244 = vmatpush1.bf16.msra.mxu0 %v224
  %245 = vmatprep.subr.bf16.mxu0 0
  %246 = vmatpush1.bf16.msra.mxu0 0
  %247 = vmatprep.subr.bf16.mxu0 0
  %248 = vmatpush1.bf16.msra.mxu0 0
  %249 = vmatprep.subr.bf16.mxu0 0
  %250 = vmatpush1.bf16.msra.mxu0 0
  %251 = vmatprep.subr.bf16.mxu0 0
  %252 = vmatpush1.bf16.msra.mxu0 0
  %253 = vmatprep.subr.bf16.mxu0 0
  %254 = vmatpush1.bf16.msra.mxu0 0
  %255 = vmatprep.subr.bf16.mxu0 0
  %256 = vmatpush1.bf16.msra.mxu0 0
  %257 = vmatprep.subr.bf16.mxu0 0
  %258 = vmatpush1.bf16.msra.mxu0 0
  %259 = vmatprep.subr.bf16.mxu0 0
  %260 = vmatpush1.bf16.msra.mxu0 0
  %261 = vmatprep.mubr.bf16.mxu0 0
  %262 = vmatmul.mubr.bf16.gmra.mrb[0].mxu0 %v199
  %v263 = vpop.f32.mrb[0].mxu0
  %v264 = vadd.f32 %v75, %v263
  %v265 = vpop.f32.mrb[0].mxu0
  %v266 = vadd.f32 %v79, %v265
  %v267 = vpop.f32.mrb[0].mxu0
  %v268 = vadd.f32 %v75, %v267
  %v269 = vpop.f32.mrb[0].mxu0
  %v270 = vadd.f32 %v79, %v269
  %271 = vmatprep.mubr.bf16.mxu0 0
  %272 = vmatmul.mubr.bf16.gmra.mrb[0].mxu0 %v202
  %v273 = vpop.f32.mrb[0].mxu0
  %v274 = vadd.f32 %v75, %v273
  %v275 = vpop.f32.mrb[0].mxu0
  %v276 = vadd.f32 %v79, %v275
  %v277 = vpop.f32.mrb[0].mxu0
  %v278 = vadd.f32 %v75, %v277
  %v279 = vpop.f32.mrb[0].mxu0
  %v280 = vadd.f32 %v79, %v279
  %281 = vmatprep.mubr.bf16.mxu0 0
  %282 = vmatmul.mubr.bf16.gmra.mrb[0].mxu0 %v205
  %v283 = vpop.f32.mrb[0].mxu0
  %v284 = vadd.f32 %v75, %v283
  %v285 = vpop.f32.mrb[0].mxu0
  %v286 = vadd.f32 %v79, %v285
  %v287 = vpop.f32.mrb[0].mxu0
  %v288 = vadd.f32 %v75, %v287
  %v289 = vpop.f32.mrb[0].mxu0
  %v290 = vadd.f32 %v79, %v289
  %291 = vmatprep.mubr.bf16.mxu0 0
  %292 = vmatmul.mubr.bf16.gmra.mrb[0].mxu0 %v208
  %v293 = vpop.f32.mrb[0].mxu0
  %v294 = vadd.f32 %v75, %v293
  %v295 = vpop.f32.mrb[0].mxu0
  %v296 = vadd.f32 %v79, %v295
  %v297 = vpop.f32.mrb[0].mxu0
  %v298 = vadd.f32 %v75, %v297
  %v299 = vpop.f32.mrb[0].mxu0
  %v300 = vadd.f32 %v79, %v299
  %301 = vmatprep.mubr.bf16.mxu0 0
  %302 = vmatmul.mubr.bf16.gmra.mrb[0].mxu0 %v211
  %v303 = vpop.f32.mrb[0].mxu0
  %v304 = vadd.f32 %v75, %v303
  %v305 = vpop.f32.mrb[0].mxu0
  %v306 = vadd.f32 %v79, %v305
  %v307 = vpop.f32.mrb[0].mxu0
  %v308 = vadd.f32 %v75, %v307
  %v309 = vpop.f32.mrb[0].mxu0
  %v310 = vadd.f32 %v79, %v309
  %311 = vmatprep.mubr.bf16.mxu0 0
  %312 = vmatmul.mubr.bf16.gmra.mrb[0].mxu0 %v214
  %v313 = vpop.f32.mrb[0].mxu0
  %v314 = vadd.f32 %v75, %v313
  %v315 = vpop.f32.mrb[0].mxu0
  %v316 = vadd.f32 %v79, %v315
  %v317 = vpop.f32.mrb[0].mxu0
  %v318 = vadd.f32 %v75, %v317
  %v319 = vpop.f32.mrb[0].mxu0
  %v320 = vadd.f32 %v79, %v319
  %321 = vmatprep.mubr.bf16.mxu0 0
  %322 = vmatmul.mubr.bf16.gmra.mrb[0].mxu0 %v217
  %v323 = vpop.f32.mrb[0].mxu0
  %v324 = vadd.f32 %v75, %v323
  %v325 = vpop.f32.mrb[0].mxu0
  %v326 = vadd.f32 %v79, %v325
  %v327 = vpop.f32.mrb[0].mxu0
  %v328 = vadd.f32 %v75, %v327
  %v329 = vpop.f32.mrb[0].mxu0
  %v330 = vadd.f32 %v79, %v329
  %331 = vmatprep.mubr.bf16.mxu0 0
  %332 = vmatmul.mubr.bf16.gmra.mrb[0].mxu0 %v220
  %v333 = vpop.f32.mrb[0].mxu0
  %v334 = vadd.f32 %v75, %v333
  %v335 = vpop.f32.mrb[0].mxu0
  %v336 = vadd.f32 %v79, %v335
  %v337 = vpop.f32.mrb[0].mxu0
  %v338 = vadd.f32 %v75, %v337
  %v339 = vpop.f32.mrb[0].mxu0
  %v340 = vadd.f32 %v79, %v339
  %341 = vdwg.mxu0
  %v342 = vmax.f32 %v264, 0.0
  %v343 = vmax.f32 %v266, 0.0
  %v344 = vmax.f32 %v268, 0.0
  %v345 = vmax.f32 %v270, 0.0
  %v346 = vmax.f32 %v274, 0.0
  %v347 = vmax.f32 %v276, 0.0
  %v348 = vmax.f32 %v278, 0.0
  %v349 = vmax.f32 %v280, 0.0
  %v350 = vmax.f32 %v284, 0.0
  %v351 = vmax.f32 %v286, 0.0
  %v352 = vmax.f32 %v288, 0.0
  %v353 = vmax.f32 %v290, 0.0
  %v354 = vmax.f32 %v294, 0.0
  %v355 = vmax.f32 %v296, 0.0
  %v356 = vmax.f32 %v298, 0.0
  %v357 = vmax.f32 %v300, 0.0
  %v358 = vmax.f32 %v304, 0.0
  %v359 = vmax.f32 %v306, 0.0
  %v360 = vmax.f32 %v308, 0.0
  %v361 = vmax.f32 %v310, 0.0
  %v362 = vmax.f32 %v314, 0.0
  %v363 = vmax.f32 %v316, 0.0
  %v364 = vmax.f32 %v318, 0.0
  %v365 = vmax.f32 %v320, 0.0
  %v366 = vmax.f32 %v324, 0.0
  %v367 = vmax.f32 %v326, 0.0
  %v368 = vmax.f32 %v328, 0.0
  %v369 = vmax.f32 %v330, 0.0
  %v370 = vmax.f32 %v334, 0.0
  %v371 = vmax.f32 %v336, 0.0
  %v372 = vmax.f32 %v338, 0.0
  %v373 = vmax.f32 %v340, 0.0
  %v374 = vpack.c.bf16 %v344, %v342
  %v375 = vpack.c.bf16 %v345, %v343
  %v376 = vpack.c.bf16 %v348, %v346
  %v377 = vpack.c.bf16 %v349, %v347
  %v378 = vpack.c.bf16 %v352, %v350
  %v379 = vpack.c.bf16 %v353, %v351
  %v380 = vpack.c.bf16 %v356, %v354
  %v381 = vpack.c.bf16 %v357, %v355
  %v382 = vpack.c.bf16 %v360, %v358
  %v383 = vpack.c.bf16 %v361, %v359
  %v384 = vpack.c.bf16 %v364, %v362
  %v385 = vpack.c.bf16 %v365, %v363
  %v386 = vpack.c.bf16 %v368, %v366
  %v387 = vpack.c.bf16 %v369, %v367
  %v388 = vpack.c.bf16 %v372, %v370
  %v389 = vpack.c.bf16 %v373, %v371
  %v390 = vld [vmem:[%s3] sm:$0xf]
  %v391 = vld [vmem:[%s3 + $0x4] sm:$0xf]
  %v392 = vld [vmem:[%s3 + $0x8] sm:$0xf]
  %v393 = vld [vmem:[%s3 + $0xc] sm:$0xf]
  %v394 = vld [vmem:[%s3 + $0x10] sm:$0xf]
  %v395 = vld [vmem:[%s3 + $0x14] sm:$0xf]
  %v396 = vld [vmem:[%s3 + $0x18] sm:$0xf]
  %v397 = vld [vmem:[%s3 + $0x1c] sm:$0xf]
  %v398 = vld [vmem:[%s3 + $0x20] sm:$0xf]
  %v399 = vld [vmem:[%s3 + $0x24] sm:$0xf]
  %v400 = vld [vmem:[%s3 + $0x28] sm:$0xf]
  %v401 = vld [vmem:[%s3 + $0x2c] sm:$0xf]
  %v402 = vld [vmem:[%s3 + $0x30] sm:$0xf]
  %v403 = vld [vmem:[%s3 + $0x34] sm:$0xf]
  %v404 = vld [vmem:[%s3 + $0x38] sm:$0xf]
  %v405 = vld [vmem:[%s3 + $0x3c] sm:$0xf]
  %v406 = vld [vmem:[%s3 + $0x40] sm:$0xf]
  %v407 = vld [vmem:[%s3 + $0x44] sm:$0xf]
  %v408 = vld [vmem:[%s3 + $0x48] sm:$0xf]
  %v409 = vld [vmem:[%s3 + $0x4c] sm:$0xf]
  %v410 = vld [vmem:[%s3 + $0x50] sm:$0xf]
  %v411 = vld [vmem:[%s3 + $0x54] sm:$0xf]
  %v412 = vld [vmem:[%s3 + $0x58] sm:$0xf]
  %v413 = vld [vmem:[%s3 + $0x5c] sm:$0xf]
  %v414 = vld [vmem:[%s4] sm:$0x1]
  %v416 = vlaneseq
  %v417 = vshrl.u32 %v416, 7
  %v418 = vsub.s32 0, %v417
  %v419 = vrot.slane %v414, %v418
  %v445 = vunpack.c.l.b16 %v390
  %v446 = vunpack.c.l.b16 %v391
  %v447 = vunpack.c.l.b16 %v392
  %v448 = vunpack.c.l.b16 %v393
  %v449 = vunpack.c.l.b16 %v394
  %v450 = vunpack.c.l.b16 %v395
  %v451 = vunpack.c.l.b16 %v396
  %v452 = vunpack.c.l.b16 %v397
  %v453 = vunpack.c.l.b16 %v398
  %v454 = vunpack.c.l.b16 %v399
  %v455 = vunpack.c.l.b16 %v400
  %v456 = vunpack.c.l.b16 %v401
  %v457 = vunpack.c.l.b16 %v402
  %v458 = vunpack.c.l.b16 %v403
  %v459 = vunpack.c.l.b16 %v404
  %v460 = vunpack.c.l.b16 %v405
  %v461 = vunpack.c.l.b16 %v406
  %v462 = vunpack.c.l.b16 %v407
  %v463 = vunpack.c.l.b16 %v408
  %v464 = vunpack.c.l.b16 %v409
  %v465 = vunpack.c.l.b16 %v410
  %v466 = vunpack.c.l.b16 %v411
  %v467 = vunpack.c.l.b16 %v412
  %v468 = vunpack.c.l.b16 %v413
  %v469 = vpack.c.b16 %v446, %v445
  %v470 = vpack.c.b16 %v448, %v447
  %v471 = vpack.c.b16 %v450, %v449
  %v472 = vpack.c.b16 %v452, %v451
  %v473 = vpack.c.b16 %v454, %v453
  %v474 = vpack.c.b16 %v456, %v455
  %v475 = vpack.c.b16 %v458, %v457
  %v476 = vpack.c.b16 %v460, %v459
  %v477 = vpack.c.b16 %v462, %v461
  %v478 = vpack.c.b16 %v464, %v463
  %v479 = vpack.c.b16 %v466, %v465
  %v480 = vpack.c.b16 %v468, %v467
  %vm493 = vcmask 523264
  %v495 = vsel %vm493, %v375, 0
  %v498 = vsel %vm493, %v377, 0
  %v501 = vsel %vm493, %v379, 0
  %v504 = vsel %vm493, %v381, 0
  %v507 = vsel %vm493, %v383, 0
  %v510 = vsel %vm493, %v385, 0
  %v513 = vsel %vm493, %v387, 0
  %v516 = vsel %vm493, %v389, 0
  %518 = vmatprep.subr.bf16.mxu0 0
  %519 = vmatpush1.bf16.msra.mxu0 %v469
  %520 = vmatprep.subr.bf16.mxu0 0
  %521 = vmatpush1.bf16.msra.mxu0 %v470
  %522 = vmatprep.subr.bf16.mxu0 0
  %523 = vmatpush1.bf16.msra.mxu0 %v471
  %524 = vmatprep.subr.bf16.mxu0 0
  %525 = vmatpush1.bf16.msra.mxu0 %v472
  %526 = vmatprep.subr.bf16.mxu0 0
  %527 = vmatpush1.bf16.msra.mxu0 %v473
  %528 = vmatprep.subr.bf16.mxu0 0
  %529 = vmatpush1.bf16.msra.mxu0 %v474
  %530 = vmatprep.subr.bf16.mxu0 0
  %531 = vmatpush1.bf16.msra.mxu0 %v475
  %532 = vmatprep.subr.bf16.mxu0 0
  %533 = vmatpush1.bf16.msra.mxu0 %v476
  %534 = vmatprep.subr.bf16.mxu0 0
  %535 = vmatpush1.bf16.msra.mxu0 %v477
  %536 = vmatprep.subr.bf16.mxu0 0
  %537 = vmatpush1.bf16.msra.mxu0 %v478
  %538 = vmatprep.subr.bf16.mxu0 0
  %539 = vmatpush1.bf16.msra.mxu0 %v479
  %540 = vmatprep.subr.bf16.mxu0 0
  %541 = vmatpush1.bf16.msra.mxu0 %v480
  %542 = vmatprep.subr.bf16.mxu0 0
  %543 = vmatpush1.bf16.msra.mxu0 0
  %544 = vmatprep.subr.bf16.mxu0 0
  %545 = vmatpush1.bf16.msra.mxu0 0
  %546 = vmatprep.subr.bf16.mxu0 0
  %547 = vmatpush1.bf16.msra.mxu0 0
  %548 = vmatprep.subr.bf16.mxu0 0
  %549 = vmatpush1.bf16.msra.mxu0 0
  %550 = vmatprep.mubr.bf16.mxu0 %v495
  %551 = vmatmul.mubr.bf16.gmra.mrb[0].mxu0 %v374
  %v552 = vpop.f32.mrb[0].mxu0
  %v553 = vadd.f32 %v419, %v552
  %v554 = vpop.f32.mrb[0].mxu0
  %v555 = vpop.f32.mrb[0].mxu0
  %v556 = vadd.f32 %v419, %v555
  %v557 = vpop.f32.mrb[0].mxu0
  %558 = vmatprep.mubr.bf16.mxu0 %v498
  %559 = vmatmul.mubr.bf16.gmra.mrb[0].mxu0 %v376
  %v560 = vpop.f32.mrb[0].mxu0
  %v561 = vadd.f32 %v419, %v560
  %v562 = vpop.f32.mrb[0].mxu0
  %v563 = vpop.f32.mrb[0].mxu0
  %v564 = vadd.f32 %v419, %v563
  %v565 = vpop.f32.mrb[0].mxu0
  %566 = vmatprep.mubr.bf16.mxu0 %v501
  %567 = vmatmul.mubr.bf16.gmra.mrb[0].mxu0 %v378
  %v568 = vpop.f32.mrb[0].mxu0
  %v569 = vadd.f32 %v419, %v568
  %v570 = vpop.f32.mrb[0].mxu0
  %v571 = vpop.f32.mrb[0].mxu0
  %v572 = vadd.f32 %v419, %v571
  %v573 = vpop.f32.mrb[0].mxu0
  %574 = vmatprep.mubr.bf16.mxu0 %v504
  %575 = vmatmul.mubr.bf16.gmra.mrb[0].mxu0 %v380
  %v576 = vpop.f32.mrb[0].mxu0
  %v577 = vadd.f32 %v419, %v576
  %v578 = vpop.f32.mrb[0].mxu0
  %v579 = vpop.f32.mrb[0].mxu0
  %v580 = vadd.f32 %v419, %v579
  %v581 = vpop.f32.mrb[0].mxu0
  %582 = vmatprep.mubr.bf16.mxu0 %v507
  %583 = vmatmul.mubr.bf16.gmra.mrb[0].mxu0 %v382
  %v584 = vpop.f32.mrb[0].mxu0
  %v585 = vadd.f32 %v419, %v584
  %v586 = vpop.f32.mrb[0].mxu0
  %v587 = vpop.f32.mrb[0].mxu0
  %v588 = vadd.f32 %v419, %v587
  %v589 = vpop.f32.mrb[0].mxu0
  %590 = vmatprep.mubr.bf16.mxu0 %v510
  %591 = vmatmul.mubr.bf16.gmra.mrb[0].mxu0 %v384
  %v592 = vpop.f32.mrb[0].mxu0
  %v593 = vadd.f32 %v419, %v592
  %v594 = vpop.f32.mrb[0].mxu0
  %v595 = vpop.f32.mrb[0].mxu0
  %v596 = vadd.f32 %v419, %v595
  %v597 = vpop.f32.mrb[0].mxu0
  %598 = vmatprep.mubr.bf16.mxu0 %v513
  %599 = vmatmul.mubr.bf16.gmra.mrb[0].mxu0 %v386
  %v600 = vpop.f32.mrb[0].mxu0
  %v601 = vadd.f32 %v419, %v600
  %v602 = vpop.f32.mrb[0].mxu0
  %v603 = vpop.f32.mrb[0].mxu0
  %v604 = vadd.f32 %v419, %v603
  %v605 = vpop.f32.mrb[0].mxu0
  %606 = vmatprep.mubr.bf16.mxu0 %v516
  %607 = vmatmul.mubr.bf16.gmra.mrb[0].mxu0 %v388
  %v608 = vpop.f32.mrb[0].mxu0
  %v609 = vadd.f32 %v419, %v608
  %v610 = vpop.f32.mrb[0].mxu0
  %v611 = vpop.f32.mrb[0].mxu0
  %v612 = vadd.f32 %v419, %v611
  %v613 = vpop.f32.mrb[0].mxu0
  %614 = vdwg.mxu0
  %v615 = vmax.f32 %v553, 0.0
  %v616 = vmax.f32 %v556, 0.0
  %v617 = vmax.f32 %v561, 0.0
  %v618 = vmax.f32 %v564, 0.0
  %v619 = vmax.f32 %v569, 0.0
  %v620 = vmax.f32 %v572, 0.0
  %v621 = vmax.f32 %v577, 0.0
  %v622 = vmax.f32 %v580, 0.0
  %v623 = vmax.f32 %v585, 0.0
  %v624 = vmax.f32 %v588, 0.0
  %v625 = vmax.f32 %v593, 0.0
  %v626 = vmax.f32 %v596, 0.0
  %v627 = vmax.f32 %v601, 0.0
  %v628 = vmax.f32 %v604, 0.0
  %v629 = vmax.f32 %v609, 0.0
  %v630 = vmax.f32 %v612, 0.0
  %v631 = vpack.c.bf16 %v616, %v615
  %v632 = vpack.c.bf16 %v618, %v617
  %v633 = vpack.c.bf16 %v620, %v619
  %v634 = vpack.c.bf16 %v622, %v621
  %v635 = vpack.c.bf16 %v624, %v623
  %v636 = vpack.c.bf16 %v626, %v625
  %v637 = vpack.c.bf16 %v628, %v627
  %v638 = vpack.c.bf16 %v630, %v629
  %v639 = vld [vmem:[%s5] sm:$0xf]
  %v640 = vld [vmem:[%s5 + $0x4] sm:$0xf]
  %v641 = vld [vmem:[%s5 + $0x8] sm:$0xf]
  %v642 = vld [vmem:[%s5 + $0xc] sm:$0xf]
  %v643 = vld [vmem:[%s5 + $0x10] sm:$0xf]
  %v644 = vld [vmem:[%s5 + $0x14] sm:$0xf]
  %v645 = vld [vmem:[%s5 + $0x18] sm:$0xf]
  %v646 = vld [vmem:[%s5 + $0x1c] sm:$0xf]
  %v647 = vld [vmem:[%s5 + $0x20] sm:$0xf]
  %v648 = vld [vmem:[%s6] sm:$0x1]
  %v650 = vlaneseq
  %v651 = vshrl.u32 %v650, 7
  %v652 = vsub.s32 0, %v651
  %v653 = vrot.slane %v648, %v652
  %v664 = vunpack.c.l.b16 %v639
  %v665 = vunpack.c.l.b16 %v640
  %v666 = vunpack.c.l.b16 %v641
  %v667 = vunpack.c.l.b16 %v642
  %v668 = vunpack.c.l.b16 %v643
  %v669 = vunpack.c.l.b16 %v644
  %v670 = vunpack.c.l.b16 %v645
  %v671 = vunpack.c.l.b16 %v646
  %v672 = vunpack.c.l.b16 %v647
  %v673 = vpack.c.b16 %v665, %v664
  %v674 = vpack.c.b16 %v667, %v666
  %v675 = vpack.c.b16 %v669, %v668
  %v676 = vpack.c.b16 %v671, %v670
  %v677 = vpack.c.b16 %v672, %v672
  %vm682 = vcmask 588800
  %v684 = vsel %vm682, %v631, 0
  %v687 = vsel %vm682, %v632, 0
  %v690 = vsel %vm682, %v633, 0
  %v693 = vsel %vm682, %v634, 0
  %v696 = vsel %vm682, %v635, 0
  %v699 = vsel %vm682, %v636, 0
  %v702 = vsel %vm682, %v637, 0
  %v705 = vsel %vm682, %v638, 0
  %v708 = vsel %vm222, %v677, 0
  %710 = vmatprep.subr.bf16.mxu0 0
  %711 = vmatpush1.bf16.msra.mxu0 %v673
  %712 = vmatprep.subr.bf16.mxu0 0
  %713 = vmatpush1.bf16.msra.mxu0 %v674
  %714 = vmatprep.subr.bf16.mxu0 0
  %715 = vmatpush1.bf16.msra.mxu0 %v675
  %716 = vmatprep.subr.bf16.mxu0 0
  %717 = vmatpush1.bf16.msra.mxu0 %v676
  %718 = vmatprep.subr.bf16.mxu0 0
  %719 = vmatpush1.bf16.msra.mxu0 %v708
  %720 = vmatprep.subr.bf16.mxu0 0
  %721 = vmatpush1.bf16.msra.mxu0 0
  %722 = vmatprep.subr.bf16.mxu0 0
  %723 = vmatpush1.bf16.msra.mxu0 0
  %724 = vmatprep.subr.bf16.mxu0 0
  %725 = vmatpush1.bf16.msra.mxu0 0
  %726 = vmatprep.subr.bf16.mxu0 0
  %727 = vmatpush1.bf16.msra.mxu0 0
  %728 = vmatprep.subr.bf16.mxu0 0
  %729 = vmatpush1.bf16.msra.mxu0 0
  %730 = vmatprep.subr.bf16.mxu0 0
  %731 = vmatpush1.bf16.msra.mxu0 0
  %732 = vmatprep.subr.bf16.mxu0 0
  %733 = vmatpush1.bf16.msra.mxu0 0
  %734 = vmatprep.subr.bf16.mxu0 0
  %735 = vmatpush1.bf16.msra.mxu0 0
  %736 = vmatprep.subr.bf16.mxu0 0
  %737 = vmatpush1.bf16.msra.mxu0 0
  %738 = vmatprep.subr.bf16.mxu0 0
  %739 = vmatpush1.bf16.msra.mxu0 0
  %740 = vmatprep.subr.bf16.mxu0 0
  %741 = vmatpush1.bf16.msra.mxu0 0
  %742 = vmatprep.mubr.bf16.mxu0 0
  %743 = vmatmul.mubr.bf16.gmra.mrb[0].mxu0 %v684
  %v744 = vpop.f32.mrb[0].mxu0
  %v745 = vadd.f32 %v653, %v744
  %v746 = vpop.f32.mrb[0].mxu0
  %v747 = vpop.f32.mrb[0].mxu0
  %v748 = vadd.f32 %v653, %v747
  %v749 = vpop.f32.mrb[0].mxu0
  %750 = vmatprep.mubr.bf16.mxu0 0
  %751 = vmatmul.mubr.bf16.gmra.mrb[0].mxu0 %v687
  %v752 = vpop.f32.mrb[0].mxu0
  %v753 = vadd.f32 %v653, %v752
  %v754 = vpop.f32.mrb[0].mxu0
  %v755 = vpop.f32.mrb[0].mxu0
  %v756 = vadd.f32 %v653, %v755
  %v757 = vpop.f32.mrb[0].mxu0
  %758 = vmatprep.mubr.bf16.mxu0 0
  %759 = vmatmul.mubr.bf16.gmra.mrb[0].mxu0 %v690
  %v760 = vpop.f32.mrb[0].mxu0
  %v761 = vadd.f32 %v653, %v760
  %v762 = vpop.f32.mrb[0].mxu0
  %v763 = vpop.f32.mrb[0].mxu0
  %v764 = vadd.f32 %v653, %v763
  %v765 = vpop.f32.mrb[0].mxu0
  %766 = vmatprep.mubr.bf16.mxu0 0
  %767 = vmatmul.mubr.bf16.gmra.mrb[0].mxu0 %v693
  %v768 = vpop.f32.mrb[0].mxu0
  %v769 = vadd.f32 %v653, %v768
  %v770 = vpop.f32.mrb[0].mxu0
  %v771 = vpop.f32.mrb[0].mxu0
  %v772 = vadd.f32 %v653, %v771
  %v773 = vpop.f32.mrb[0].mxu0
  %774 = vmatprep.mubr.bf16.mxu0 0
  %775 = vmatmul.mubr.bf16.gmra.mrb[0].mxu0 %v696
  %v776 = vpop.f32.mrb[0].mxu0
  %v777 = vadd.f32 %v653, %v776
  %v778 = vpop.f32.mrb[0].mxu0
  %v779 = vpop.f32.mrb[0].mxu0
  %v780 = vadd.f32 %v653, %v779
  %v781 = vpop.f32.mrb[0].mxu0
  %782 = vmatprep.mubr.bf16.mxu0 0
  %783 = vmatmul.mubr.bf16.gmra.mrb[0].mxu0 %v699
  %v784 = vpop.f32.mrb[0].mxu0
  %v785 = vadd.f32 %v653, %v784
  %v786 = vpop.f32.mrb[0].mxu0
  %v787 = vpop.f32.mrb[0].mxu0
  %v788 = vadd.f32 %v653, %v787
  %v789 = vpop.f32.mrb[0].mxu0
  %790 = vmatprep.mubr.bf16.mxu0 0
  %791 = vmatmul.mubr.bf16.gmra.mrb[0].mxu0 %v702
  %v792 = vpop.f32.mrb[0].mxu0
  %v793 = vadd.f32 %v653, %v792
  %v794 = vpop.f32.mrb[0].mxu0
  %v795 = vpop.f32.mrb[0].mxu0
  %v796 = vadd.f32 %v653, %v795
  %v797 = vpop.f32.mrb[0].mxu0
  %798 = vmatprep.mubr.bf16.mxu0 0
  %799 = vmatmul.mubr.bf16.gmra.mrb[0].mxu0 %v705
  %v800 = vpop.f32.mrb[0].mxu0
  %v801 = vadd.f32 %v653, %v800
  %v802 = vpop.f32.mrb[0].mxu0
  %v803 = vpop.f32.mrb[0].mxu0
  %v804 = vadd.f32 %v653, %v803
  %v805 = vpop.f32.mrb[0].mxu0
  %806 = vdwg.mxu0
  %v807 = vmax.f32 %v745, 0.0
  %v808 = vmax.f32 %v748, 0.0
  %v809 = vmax.f32 %v753, 0.0
  %v810 = vmax.f32 %v756, 0.0
  %v811 = vmax.f32 %v761, 0.0
  %v812 = vmax.f32 %v764, 0.0
  %v813 = vmax.f32 %v769, 0.0
  %v814 = vmax.f32 %v772, 0.0
  %v815 = vmax.f32 %v777, 0.0
  %v816 = vmax.f32 %v780, 0.0
  %v817 = vmax.f32 %v785, 0.0
  %v818 = vmax.f32 %v788, 0.0
  %v819 = vmax.f32 %v793, 0.0
  %v820 = vmax.f32 %v796, 0.0
  %v821 = vmax.f32 %v801, 0.0
  %v822 = vmax.f32 %v804, 0.0
  %v823 = vpack.c.bf16 %v808, %v807
  %v824 = vpack.c.bf16 %v810, %v809
  %v825 = vpack.c.bf16 %v812, %v811
  %v826 = vpack.c.bf16 %v814, %v813
  %v827 = vpack.c.bf16 %v816, %v815
  %v828 = vpack.c.bf16 %v818, %v817
  %v829 = vpack.c.bf16 %v820, %v819
  %v830 = vpack.c.bf16 %v822, %v821
  %v831 = vld [vmem:[%s7] sm:$0xf]
  %v832 = vld [vmem:[%s7 + $0x4] sm:$0xf]
  %v833 = vld [vmem:[%s7 + $0x8] sm:$0xf]
  %v834 = vld [vmem:[%s7 + $0xc] sm:$0xf]
  %v835 = vld [vmem:[%s7 + $0x10] sm:$0xf]
  %v836 = vld [vmem:[%s7 + $0x14] sm:$0xf]
  %v837 = vld [vmem:[%s7 + $0x18] sm:$0xf]
  %v838 = vld [vmem:[%s7 + $0x1c] sm:$0xf]
  %v839 = vld [vmem:[%s7 + $0x20] sm:$0xf]
  %v840 = vld [vmem:[%s7 + $0x24] sm:$0xf]
  %v841 = vld [vmem:[%s7 + $0x28] sm:$0xf]
  %v842 = vld [vmem:[%s7 + $0x2c] sm:$0xf]
  %v843 = vld [vmem:[%s7 + $0x30] sm:$0xf]
  %v844 = vld [vmem:[%s7 + $0x34] sm:$0xf]
  %v845 = vld [vmem:[%s7 + $0x38] sm:$0xf]
  %v846 = vld [vmem:[%s8] sm:$0x1]
  %v848 = vlaneseq
  %v849 = vshrl.u32 %v848, 7
  %v850 = vsub.s32 0, %v849
  %v851 = vrot.slane %v846, %v850
  %v868 = vunpack.c.l.b16 %v831
  %v869 = vunpack.c.l.b16 %v832
  %v870 = vunpack.c.l.b16 %v833
  %v871 = vunpack.c.l.b16 %v834
  %v872 = vunpack.c.l.b16 %v835
  %v873 = vunpack.c.l.b16 %v836
  %v874 = vunpack.c.l.b16 %v837
  %v875 = vunpack.c.l.b16 %v838
  %v876 = vunpack.c.l.b16 %v839
  %v877 = vunpack.c.l.b16 %v840
  %v878 = vunpack.c.l.b16 %v841
  %v879 = vunpack.c.l.b16 %v842
  %v880 = vunpack.c.l.b16 %v843
  %v881 = vunpack.c.l.b16 %v844
  %v882 = vunpack.c.l.b16 %v845
  %v883 = vpack.c.b16 %v869, %v868
  %v884 = vpack.c.b16 %v871, %v870
  %v885 = vpack.c.b16 %v873, %v872
  %v886 = vpack.c.b16 %v875, %v874
  %v887 = vpack.c.b16 %v877, %v876
  %v888 = vpack.c.b16 %v879, %v878
  %v889 = vpack.c.b16 %v881, %v880
  %v890 = vpack.c.b16 %v882, %v882
  %v899 = vsel %vm197, %v823, 0
  %v902 = vsel %vm197, %v824, 0
  %v905 = vsel %vm197, %v825, 0
  %v908 = vsel %vm197, %v826, 0
  %v911 = vsel %vm197, %v827, 0
  %v914 = vsel %vm197, %v828, 0
  %v917 = vsel %vm197, %v829, 0
  %v920 = vsel %vm197, %v830, 0
  %v923 = vsel %vm222, %v890, 0
  %925 = vmatprep.subr.bf16.mxu0 0
  %926 = vmatpush1.bf16.msra.mxu0 %v883
  %927 = vmatprep.subr.bf16.mxu0 0
  %928 = vmatpush1.bf16.msra.mxu0 %v884
  %929 = vmatprep.subr.bf16.mxu0 0
  %930 = vmatpush1.bf16.msra.mxu0 %v885
  %931 = vmatprep.subr.bf16.mxu0 0
  %932 = vmatpush1.bf16.msra.mxu0 %v886
  %933 = vmatprep.subr.bf16.mxu0 0
  %934 = vmatpush1.bf16.msra.mxu0 %v887
  %935 = vmatprep.subr.bf16.mxu0 0
  %936 = vmatpush1.bf16.msra.mxu0 %v888
  %937 = vmatprep.subr.bf16.mxu0 0
  %938 = vmatpush1.bf16.msra.mxu0 %v889
  %939 = vmatprep.subr.bf16.mxu0 0
  %940 = vmatpush1.bf16.msra.mxu0 %v923
  %941 = vmatprep.subr.bf16.mxu0 0
  %942 = vmatpush1.bf16.msra.mxu0 0
  %943 = vmatprep.subr.bf16.mxu0 0
  %944 = vmatpush1.bf16.msra.mxu0 0
  %945 = vmatprep.subr.bf16.mxu0 0
  %946 = vmatpush1.bf16.msra.mxu0 0
  %947 = vmatprep.subr.bf16.mxu0 0
  %948 = vmatpush1.bf16.msra.mxu0 0
  %949 = vmatprep.subr.bf16.mxu0 0
  %950 = vmatpush1.bf16.msra.mxu0 0
  %951 = vmatprep.subr.bf16.mxu0 0
  %952 = vmatpush1.bf16.msra.mxu0 0
  %953 = vmatprep.subr.bf16.mxu0 0
  %954 = vmatpush1.bf16.msra.mxu0 0
  %955 = vmatprep.subr.bf16.mxu0 0
  %956 = vmatpush1.bf16.msra.mxu0 0
  %957 = vmatprep.mubr.bf16.mxu0 0
  %958 = vmatmul.mubr.bf16.gmra.mrb[0].mxu0 %v899
  %v959 = vpop.f32.mrb[0].mxu0
  %v960 = vadd.f32 %v851, %v959
  %v961 = vpop.f32.mrb[0].mxu0
  %v962 = vpop.f32.mrb[0].mxu0
  %v963 = vadd.f32 %v851, %v962
  %v964 = vpop.f32.mrb[0].mxu0
  %965 = vmatprep.mubr.bf16.mxu0 0
  %966 = vmatmul.mubr.bf16.gmra.mrb[0].mxu0 %v902
  %v967 = vpop.f32.mrb[0].mxu0
  %v968 = vadd.f32 %v851, %v967
  %v969 = vpop.f32.mrb[0].mxu0
  %v970 = vpop.f32.mrb[0].mxu0
  %v971 = vadd.f32 %v851, %v970
  %v972 = vpop.f32.mrb[0].mxu0
  %973 = vmatprep.mubr.bf16.mxu0 0
  %974 = vmatmul.mubr.bf16.gmra.mrb[0].mxu0 %v905
  %v975 = vpop.f32.mrb[0].mxu0
  %v976 = vadd.f32 %v851, %v975
  %v977 = vpop.f32.mrb[0].mxu0
  %v978 = vpop.f32.mrb[0].mxu0
  %v979 = vadd.f32 %v851, %v978
  %v980 = vpop.f32.mrb[0].mxu0
  %981 = vmatprep.mubr.bf16.mxu0 0
  %982 = vmatmul.mubr.bf16.gmra.mrb[0].mxu0 %v908
  %v983 = vpop.f32.mrb[0].mxu0
  %v984 = vadd.f32 %v851, %v983
  %v985 = vpop.f32.mrb[0].mxu0
  %v986 = vpop.f32.mrb[0].mxu0
  %v987 = vadd.f32 %v851, %v986
  %v988 = vpop.f32.mrb[0].mxu0
  %989 = vmatprep.mubr.bf16.mxu0 0
  %990 = vmatmul.mubr.bf16.gmra.mrb[0].mxu0 %v911
  %v991 = vpop.f32.mrb[0].mxu0
  %v992 = vadd.f32 %v851, %v991
  %v993 = vpop.f32.mrb[0].mxu0
  %v994 = vpop.f32.mrb[0].mxu0
  %v995 = vadd.f32 %v851, %v994
  %v996 = vpop.f32.mrb[0].mxu0
  %997 = vmatprep.mubr.bf16.mxu0 0
  %998 = vmatmul.mubr.bf16.gmra.mrb[0].mxu0 %v914
  %v999 = vpop.f32.mrb[0].mxu0
  %v1000 = vadd.f32 %v851, %v999
  %v1001 = vpop.f32.mrb[0].mxu0
  %v1002 = vpop.f32.mrb[0].mxu0
  %v1003 = vadd.f32 %v851, %v1002
  %v1004 = vpop.f32.mrb[0].mxu0
  %1005 = vmatprep.mubr.bf16.mxu0 0
  %1006 = vmatmul.mubr.bf16.gmra.mrb[0].mxu0 %v917
  %v1007 = vpop.f32.mrb[0].mxu0
  %v1008 = vadd.f32 %v851, %v1007
  %v1009 = vpop.f32.mrb[0].mxu0
  %v1010 = vpop.f32.mrb[0].mxu0
  %v1011 = vadd.f32 %v851, %v1010
  %v1012 = vpop.f32.mrb[0].mxu0
  %1013 = vmatprep.mubr.bf16.mxu0 0
  %1014 = vmatmul.mubr.bf16.gmra.mrb[0].mxu0 %v920
  %v1015 = vpop.f32.mrb[0].mxu0
  %v1016 = vadd.f32 %v851, %v1015
  %v1017 = vpop.f32.mrb[0].mxu0
  %v1018 = vpop.f32.mrb[0].mxu0
  %v1019 = vadd.f32 %v851, %v1018
  %v1020 = vpop.f32.mrb[0].mxu0
  %1021 = vdwg.mxu0
  %v1022 = vmax.f32 %v960, 0.0
  %v1023 = vmax.f32 %v963, 0.0
  %v1024 = vmax.f32 %v968, 0.0
  %v1025 = vmax.f32 %v971, 0.0
  %v1026 = vmax.f32 %v976, 0.0
  %v1027 = vmax.f32 %v979, 0.0
  %v1028 = vmax.f32 %v984, 0.0
  %v1029 = vmax.f32 %v987, 0.0
  %v1030 = vmax.f32 %v992, 0.0
  %v1031 = vmax.f32 %v995, 0.0
  %v1032 = vmax.f32 %v1000, 0.0
  %v1033 = vmax.f32 %v1003, 0.0
  %v1034 = vmax.f32 %v1008, 0.0
  %v1035 = vmax.f32 %v1011, 0.0
  %v1036 = vmax.f32 %v1016, 0.0
  %v1037 = vmax.f32 %v1019, 0.0
  %v1038 = vpack.c.bf16 %v1023, %v1022
  %v1039 = vpack.c.bf16 %v1025, %v1024
  %v1040 = vpack.c.bf16 %v1027, %v1026
  %v1041 = vpack.c.bf16 %v1029, %v1028
  %v1042 = vpack.c.bf16 %v1031, %v1030
  %v1043 = vpack.c.bf16 %v1033, %v1032
  %v1044 = vpack.c.bf16 %v1035, %v1034
  %v1045 = vpack.c.bf16 %v1037, %v1036
  %v1046 = vld [vmem:[%s9] sm:$0xf]
  %v1047 = vld [vmem:[%s10] sm:$0xff]
  %1049 = vset.pattern.permute.xlu0 0
  %1050 = vperm.xlu0 %1049, %v1047
  %v1051 = vpop.permute.xlu0 %1050
  %vm1053 = vcmask 687104
  %v1055 = vsel %vm1053, %v1046, 0
  %v1058 = vsel %vm1053, %v1038, 0
  %v1061 = vsel %vm1053, %v1039, 0
  %v1064 = vsel %vm1053, %v1040, 0
  %v1067 = vsel %vm1053, %v1041, 0
  %v1070 = vsel %vm1053, %v1042, 0
  %v1073 = vsel %vm1053, %v1043, 0
  %v1076 = vsel %vm1053, %v1044, 0
  %v1079 = vsel %vm1053, %v1045, 0
  %1081 = vmatprep.subr.bf16.mxu0 0
  %1082 = vmatpush1.bf16.xpose.msra.mxu0 %v1058
  %1083 = vmatprep.subr.bf16.mxu0 0
  %1084 = vmatpush1.bf16.xpose.msra.mxu0 %v1061
  %1085 = vmatprep.subr.bf16.mxu0 0
  %1086 = vmatpush1.bf16.xpose.msra.mxu0 %v1064
  %1087 = vmatprep.subr.bf16.mxu0 0
  %1088 = vmatpush1.bf16.xpose.msra.mxu0 %v1067
  %1089 = vmatprep.subr.bf16.mxu0 0
  %1090 = vmatpush1.bf16.xpose.msra.mxu0 %v1070
  %1091 = vmatprep.subr.bf16.mxu0 0
  %1092 = vmatpush1.bf16.xpose.msra.mxu0 %v1073
  %1093 = vmatprep.subr.bf16.mxu0 0
  %1094 = vmatpush1.bf16.xpose.msra.mxu0 %v1076
  %1095 = vmatprep.subr.bf16.mxu0 0
  %1096 = vmatpush1.bf16.xpose.msra.mxu0 %v1079
  %1097 = vmatprep.subr.bf16.mxu0 0
  %1098 = vmatpush1.bf16.xpose.msra.mxu0 0
  %1099 = vmatprep.subr.bf16.mxu0 0
  %1100 = vmatpush1.bf16.xpose.msra.mxu0 0
  %1101 = vmatprep.subr.bf16.mxu0 0
  %1102 = vmatpush1.bf16.xpose.msra.mxu0 0
  %1103 = vmatprep.subr.bf16.mxu0 0
  %1104 = vmatpush1.bf16.xpose.msra.mxu0 0
  %1105 = vmatprep.subr.bf16.mxu0 0
  %1106 = vmatpush1.bf16.xpose.msra.mxu0 0
  %1107 = vmatprep.subr.bf16.mxu0 0
  %1108 = vmatpush1.bf16.xpose.msra.mxu0 0
  %1109 = vmatprep.subr.bf16.mxu0 0
  %1110 = vmatpush1.bf16.xpose.msra.mxu0 0
  %1111 = vmatprep.subr.bf16.mxu0 0
  %1112 = vmatpush1.bf16.xpose.msra.mxu0 0
  %1113 = vmatprep.mubr.bf16.mxu0 0
  %1114 = vmatmul.mubr.bf16.gmra.mrb[0].mxu0 %v1055
  %v1115 = vpop.f32.mrb[0].mxu0
  %v1116 = vadd.f32 %v1051, %v1115
  %v1117 = vpop.f32.mrb[0].mxu0
  %v1118 = vpop.f32.mrb[0].mxu0
  %v1119 = vpop.f32.mrb[0].mxu0
  %1120 = vdwg.mxu0
  %1121 = vst [vmem:[%s11] sm:$0xff] %v1116
  // Predicated region
  $region46: #{mynet3_forward.1} parent=0 // pred_check
    _
  $region47: #{mynet3_forward.1} parent=0 // pred_check_branch
    %1123 = sbr.rel (0) target = $region49
  $region48: #{mynet3_forward.1} parent=0 // pred_region
    _
  $region49: #{mynet3_forward.1} parent=0 // pred_fallthru
    _
  // Predicated region
  $region50: #{mynet3_forward.1} parent=0 // pred_check
    _
  $region51: #{mynet3_forward.1} parent=0 // pred_check_branch
    %1125 = sbr.rel (0) target = $region53
  $region52: #{mynet3_forward.1} parent=0 // pred_region
    _
  $region53: #{mynet3_forward.1} parent=0 // pred_fallthru
    _

</llo_original>
